<compile_context>
chip_gen: v7x
topology: tpu7x:2x2x1
jax: 0.10.0
libtpu: 0.0.40
codegen_flags: <defaults>
</compile_context>

<pallas_src>
import functools

import jax
import jax.numpy as jnp
from jax.experimental import pallas as pl
from jax.experimental.pallas import tpu as pltpu


def _round_up(x, m):
    return ((x + m - 1) // m) * m


def cnet25_kernel(s_ref, a_ref, ws_ref, wa_ref, b_ref, wo_ref, bo_ref, o_ref):
    # x = s @ Ws.T ; y = a @ Wa.T   (two tiny-K MXU matmuls, f32 accumulation)
    x = jnp.dot(s_ref[...], ws_ref[...], preferred_element_type=jnp.float32)
    y = jnp.dot(a_ref[...], wa_ref[...], preferred_element_type=jnp.float32)
    # h = relu(x + y + (bs + ba))   -- bias pre-summed at init time
    h = jnp.maximum(x + y + b_ref[...], 0.0)
    # q = h @ Wo.T + bo             -- MXU (plenty of slack); bo is SMEM scalar
    q = jnp.dot(h, wo_ref[...], preferred_element_type=jnp.float32) + bo_ref[0, 0]
    o_ref[...] = q.astype(o_ref.dtype)


@functools.partial(jax.jit, static_argnames=("tm", "mxu_dtype"))
def cnet25_forward(s, a, params, *, tm=4096, mxu_dtype=None):
    """s: (B, s_dim), a: (B, a_dim). Returns (B, 1) float32.

    mxu_dtype=jnp.bfloat16 casts activations + weights for the MXU matmuls
    (recommended on v5e); accumulation and the epilogue stay float32.
    """
    ws_t, wa_t, b, wo_col, bo = params
    B, s_dim = s.shape
    a_dim = a.shape[1]
    hidden = ws_t.shape[1]

    if mxu_dtype is not None:
        s = s.astype(mxu_dtype)
        a = a.astype(mxu_dtype)
        ws_t = ws_t.astype(mxu_dtype)
        wa_t = wa_t.astype(mxu_dtype)

    # Batch tile size: sublane-aligned, capped so the grid has >= 2 steps
    # whenever B > 8 (lets v7x shard the "parallel" axis across its 2 TCs).
    half = -(-B // 2)
    tm_cap = max(8, _round_up(half, 8))
    tm = min(_round_up(tm, 8), tm_cap)
    grid = (pl.cdiv(B, tm),)

    act_bytes = s.dtype.itemsize
    cost = pl.CostEstimate(
        flops=2 * B * hidden * (s_dim + a_dim + 1),
        transcendentals=0,
        bytes_accessed=(
            B * (s_dim + a_dim) * act_bytes          # activations in
            + B * 1 * 4                              # q out
            + (s_dim + a_dim) * hidden * act_bytes   # fused weights
            + (2 * hidden + 1) * 4                   # biases + wo column
        ),
    )

    out = pl.pallas_call(
        cnet25_kernel,
        out_shape=jax.ShapeDtypeStruct((B, 1), jnp.float32),
        grid=grid,
        in_specs=[
            # batch-tiled activations (ragged last block handled by Pallas)
            pl.BlockSpec((tm, s_dim), lambda i: (i, 0)),
            pl.BlockSpec((tm, a_dim), lambda i: (i, 0)),
            # weights / biases: constant index_maps -> resident across steps
            pl.BlockSpec((s_dim, hidden), lambda i: (0, 0)),
            pl.BlockSpec((a_dim, hidden), lambda i: (0, 0)),
            pl.BlockSpec((1, hidden), lambda i: (0, 0)),
            pl.BlockSpec((hidden, 1), lambda i: (0, 0)),
            # scalar output bias in SMEM
            pl.BlockSpec(memory_space=pltpu.MemorySpace.SMEM),
        ],
        out_specs=pl.BlockSpec((tm, 1), lambda i: (i, 0)),
        compiler_params=pltpu.CompilerParams(
            dimension_semantics=("parallel",),
        ),
        cost_estimate=cost,
    )(s, a, ws_t, wa_t, b, wo_col, bo)

    return out


def init_params(key, s_dim, a_dim, hidden_dim=128):
    """Deterministic init mimicking the PyTorch module:
    weights ~ N(0, 0.1); biases ~ U(-1/sqrt(fan_in), 1/sqrt(fan_in)).
    Returns (raw reference params, kernel params)."""
    ks = jax.random.split(key, 6)
    ws = 0.1 * jax.random.normal(ks[0], (hidden_dim, s_dim), jnp.float32)      # fcs.weight
    bs = jax.random.uniform(ks[1], (hidden_dim,), jnp.float32,
                            -1.0 / jnp.sqrt(s_dim), 1.0 / jnp.sqrt(s_dim))     # fcs.bias
    wa = 0.1 * jax.random.normal(ks[2], (hidden_dim, a_dim), jnp.float32)      # fca.weight
    ba = jax.random.uniform(ks[3], (hidden_dim,), jnp.float32,
                            -1.0 / jnp.sqrt(a_dim), 1.0 / jnp.sqrt(a_dim))     # fca.bias
    wo = 0.1 * jax.random.normal(ks[4], (1, hidden_dim), jnp.float32)          # out.weight
    bo = jax.random.uniform(ks[5], (1,), jnp.float32,
                            -1.0 / jnp.sqrt(hidden_dim), 1.0 / jnp.sqrt(hidden_dim))  # out.bias

    raw = (ws, bs, wa, ba, wo, bo)
    # Kernel params:
    #   Ws.T (s_dim, hidden), Wa.T (a_dim, hidden)
    #   b   = bs + ba  (1, hidden)    -- pre-summed bias
    #   wo_col         (hidden, 1)    -- final projection column
    #   bo             (1, 1)         -- SMEM scalar
    kernel_params = (
        ws.T,
        wa.T,
        (bs + ba).reshape(1, hidden_dim),
        wo.reshape(hidden_dim, 1),
        bo.reshape(1, 1),
    )
    return raw, kernel_params


def reference_forward(s, a, raw_params):
    ws, bs, wa, ba, wo, bo = raw_params
    x = s @ ws.T + bs
    y = a @ wa.T + ba
    xy = jnp.maximum(x + y, 0.0)
    return xy @ wo.T + bo


if __name__ == "__main__":
    key = jax.random.PRNGKey(0)
    k_s, k_a, k_p, k_s2, k_a2 = jax.random.split(key, 5)

    S_DIM, A_DIM, HIDDEN = 16, 4, 128
    raw_params, kernel_params = init_params(k_p, S_DIM, A_DIM, HIDDEN)

    # Small batch (single grid step).
    B = 8
    s = jax.random.normal(k_s, (B, S_DIM), jnp.float32)
    a = jax.random.normal(k_a, (B, A_DIM), jnp.float32)
    q = cnet25_forward(s, a, kernel_params)
    jax.block_until_ready(q)
    q_ref = reference_forward(s, a, raw_params)
    assert q.shape == (B, 1)
    assert jnp.allclose(q, q_ref, atol=1e-4, rtol=1e-4), "mismatch vs reference (B=8)"

    # Larger, non-multiple batch: exercises multi-step grid + ragged last block.
    B2 = 50
    s2 = jax.random.normal(k_s2, (B2, S_DIM), jnp.float32)
    a2 = jax.random.normal(k_a2, (B2, A_DIM), jnp.float32)
    q2 = cnet25_forward(s2, a2, kernel_params)
    jax.block_until_ready(q2)
    q2_ref = reference_forward(s2, a2, raw_params)
    assert q2.shape == (B2, 1)
    assert jnp.allclose(q2, q2_ref, atol=1e-4, rtol=1e-4), "mismatch vs reference (B=50)"

    print("KERNEL_OK")
</pallas_src>

<mosaic_0001>
module attributes {stable_mosaic.version = 11 : i64} {
  func.func @cnet25_kernel(%arg0: i32, %arg1: memref<8x16xf32, #tpu.memory_space<vmem>>, %arg2: memref<8x4xf32, #tpu.memory_space<vmem>>, %arg3: memref<16x128xf32, #tpu.memory_space<vmem>>, %arg4: memref<4x128xf32, #tpu.memory_space<vmem>>, %arg5: memref<1x128xf32, #tpu.memory_space<vmem>>, %arg6: memref<128x1xf32, #tpu.memory_space<vmem>>, %arg7: memref<1x1xf32, #tpu.memory_space<smem>>, %arg8: memref<8x1xf32, #tpu.memory_space<vmem>>) attributes {dimension_semantics = [#tpu.dimension_semantics<parallel>], iteration_bounds = array<i64: 1>, scalar_prefetch = 0 : i64, scratch_operands = 0 : i64, tpu.core_type = #tpu.core_type<tc>, window_params = [{transform_indices = @transform_0, window_bounds = array<i64: 8, 16>}, {transform_indices = @transform_1, window_bounds = array<i64: 8, 4>}, {pipeline_mode = #tpu.pipeline_mode<synchronous>, transform_indices = @transform_2, window_bounds = array<i64: 16, 128>}, {pipeline_mode = #tpu.pipeline_mode<synchronous>, transform_indices = @transform_3, window_bounds = array<i64: 4, 128>}, {pipeline_mode = #tpu.pipeline_mode<synchronous>, transform_indices = @transform_4, window_bounds = array<i64: 1, 128>}, {pipeline_mode = #tpu.pipeline_mode<synchronous>, transform_indices = @transform_5, window_bounds = array<i64: 128, 1>}, {transform_indices = @transform_6, window_bounds = array<i64: 1, 1>}, {transform_indices = @transform_7, window_bounds = array<i64: 8, 1>}]} {
    %c0 = arith.constant 0 : index
    %c0_0 = arith.constant 0 : index
    %0 = vector.load %arg1[%c0, %c0_0] : memref<8x16xf32, #tpu.memory_space<vmem>>, vector<8x16xf32>
    %c0_1 = arith.constant 0 : index
    %c0_2 = arith.constant 0 : index
    %1 = vector.load %arg3[%c0_1, %c0_2] : memref<16x128xf32, #tpu.memory_space<vmem>>, vector<16x128xf32>
    %cst = arith.constant dense<0.000000e+00> : vector<8x128xf32>
    %2 = tpu.matmul %0, %1, %cst {dimension_numbers = #tpu.dot_dimension_numbers<[1], [0], [0], [1], [0, 0, 1, 1], [], []>} : vector<8x16xf32>, vector<16x128xf32>, vector<8x128xf32> -> vector<8x128xf32>
    %c0_3 = arith.constant 0 : index
    %c0_4 = arith.constant 0 : index
    %3 = vector.load %arg2[%c0_3, %c0_4] : memref<8x4xf32, #tpu.memory_space<vmem>>, vector<8x4xf32>
    %c0_5 = arith.constant 0 : index
    %c0_6 = arith.constant 0 : index
    %4 = vector.load %arg4[%c0_5, %c0_6] : memref<4x128xf32, #tpu.memory_space<vmem>>, vector<4x128xf32>
    %cst_7 = arith.constant dense<0.000000e+00> : vector<8x128xf32>
    %5 = tpu.matmul %3, %4, %cst_7 {dimension_numbers = #tpu.dot_dimension_numbers<[1], [0], [0], [1], [0, 0, 1, 1], [], []>} : vector<8x4xf32>, vector<4x128xf32>, vector<8x128xf32> -> vector<8x128xf32>
    %6 = arith.addf %2, %5 : vector<8x128xf32>
    %c0_8 = arith.constant 0 : index
    %c0_9 = arith.constant 0 : index
    %7 = vector.load %arg5[%c0_8, %c0_9] : memref<1x128xf32, #tpu.memory_space<vmem>>, vector<1x128xf32>
    %8 = vector.broadcast %7 : vector<1x128xf32> to vector<8x128xf32>
    %9 = arith.addf %6, %8 : vector<8x128xf32>
    %cst_10 = arith.constant 0.000000e+00 : f32
    %10 = vector.broadcast %cst_10 : f32 to vector<8x128xf32>
    %11 = arith.maximumf %9, %10 : vector<8x128xf32>
    %c0_11 = arith.constant 0 : index
    %c0_12 = arith.constant 0 : index
    %12 = vector.load %arg6[%c0_11, %c0_12] : memref<128x1xf32, #tpu.memory_space<vmem>>, vector<128x1xf32>
    %cst_13 = arith.constant dense<0.000000e+00> : vector<8x1xf32>
    %13 = tpu.matmul %11, %12, %cst_13 {dimension_numbers = #tpu.dot_dimension_numbers<[1], [0], [0], [1], [0, 0, 1, 1], [], []>} : vector<8x128xf32>, vector<128x1xf32>, vector<8x1xf32> -> vector<8x1xf32>
    %c0_14 = arith.constant 0 : index
    %c0_15 = arith.constant 0 : index
    %14 = memref.load %arg7[%c0_14, %c0_15] : memref<1x1xf32, #tpu.memory_space<smem>>
    %15 = vector.broadcast %14 : f32 to vector<8x1xf32>
    %16 = arith.addf %13, %15 : vector<8x1xf32>
    %c0_16 = arith.constant 0 : index
    %c0_17 = arith.constant 0 : index
    %17 = vector.load %arg8[%c0_16, %c0_17] : memref<8x1xf32, #tpu.memory_space<vmem>>, vector<8x1xf32>
    tpu.vector_store %arg8[%c0_16, %c0_17], %16 {strides = array<i32>} : memref<8x1xf32, #tpu.memory_space<vmem>>, vector<8x1xf32>,
    return
  }
  func.func @transform_0(%arg0: i32) -> (i32, i32) {
    %c0_i32 = arith.constant 0 : i32
    %c0_i32_0 = arith.constant 0 : i32
    return %arg0, %c0_i32 : i32, i32
  }
  func.func @transform_1(%arg0: i32) -> (i32, i32) {
    %c0_i32 = arith.constant 0 : i32
    %c0_i32_0 = arith.constant 0 : i32
    return %arg0, %c0_i32 : i32, i32
  }
  func.func @transform_2(%arg0: i32) -> (i32, i32) {
    %c0_i32 = arith.constant 0 : i32
    %c0_i32_0 = arith.constant 0 : i32
    %c0_i32_1 = arith.constant 0 : i32
    return %c0_i32, %c0_i32_0 : i32, i32
  }
  func.func @transform_3(%arg0: i32) -> (i32, i32) {
    %c0_i32 = arith.constant 0 : i32
    %c0_i32_0 = arith.constant 0 : i32
    %c0_i32_1 = arith.constant 0 : i32
    return %c0_i32, %c0_i32_0 : i32, i32
  }
  func.func @transform_4(%arg0: i32) -> (i32, i32) {
    %c0_i32 = arith.constant 0 : i32
    %c0_i32_0 = arith.constant 0 : i32
    %c0_i32_1 = arith.constant 0 : i32
    return %c0_i32, %c0_i32_0 : i32, i32
  }
  func.func @transform_5(%arg0: i32) -> (i32, i32) {
    %c0_i32 = arith.constant 0 : i32
    %c0_i32_0 = arith.constant 0 : i32
    %c0_i32_1 = arith.constant 0 : i32
    return %c0_i32, %c0_i32_0 : i32, i32
  }
  func.func @transform_6(%arg0: i32) -> (i32, i32) {
    %c0_i32 = arith.constant 0 : i32
    %c0_i32_0 = arith.constant 0 : i32
    %c0_i32_1 = arith.constant 0 : i32
    return %c0_i32, %c0_i32_0 : i32, i32
  }
  func.func @transform_7(%arg0: i32) -> (i32, i32) {
    %c0_i32 = arith.constant 0 : i32
    %c0_i32_0 = arith.constant 0 : i32
    return %arg0, %c0_i32 : i32, i32
  }
}

</mosaic_0001>

<llo_original>
// kernel: cnet25_forward.1
$region0: #{cnet25_forward.1}
  #allocation0 [shape = 'u32[]', space=smem, size = 0x4, offset = 0x4, fixed_abs, tag = 'smem constant byte address 0x4 - core index']
  #allocation1 [shape = 'u32[144,128]{1,0:T(1,128)}', space=vmem, size = 0x12000, scoped, tag = 'internal scratch']
  #allocation2 [shape = 'f32[1,1]{1,0:T(1,128)S(6)}', space=smem, size = 0x200, scoped, tag = 'scoped memory for cnet25_forward.1']
  %s0 = inlined_call_operand.vmem [shape: f32[8,16], index: 0, kind: input, shape index: {}]
  %s1 = inlined_call_operand.vmem [shape: f32[8,4], index: 1, kind: input, shape index: {}]
  %s2 = inlined_call_operand.vmem [shape: f32[16,128], index: 2, kind: input, shape index: {}]
  %s3 = inlined_call_operand.vmem [shape: f32[4,128], index: 3, kind: input, shape index: {}]
  %s4 = inlined_call_operand.vmem [shape: f32[1,128], index: 4, kind: input, shape index: {}]
  %s5 = inlined_call_operand.vmem [shape: f32[128,1], index: 5, kind: input, shape index: {}]
  %s6 = inlined_call_operand.<no memory space> [shape: f32[1,1], index: 6, kind: input, shape index: {}]
  %s7 = inlined_call_operand.vmem [shape: f32[8,1], index: 7, kind: output, shape index: {}]
  %s8 = sld [smem:[#allocation0]]
  $region38: #{cnet25_forward.1} parent=0
    _
  %s10 = ssub.s32 1, %s8
  %s11 = scalar_select 0, %s10, %s8
  %12 = sst [smem:[#allocation2]] %s6
  // Predicated region
  $region2: #{cnet25_forward.1} parent=0 // pred_check
    _
  $region3: #{cnet25_forward.1} parent=0 // pred_check_branch
    %14 = sbr.rel (0) target = $region5
  $region4: #{cnet25_forward.1} parent=0 // pred_region
    _
  $region5: #{cnet25_forward.1} parent=0 // pred_fallthru
    _
  // Predicated region
  $region6: #{cnet25_forward.1} parent=0 // pred_check
    _
  $region7: #{cnet25_forward.1} parent=0 // pred_check_branch
    %16 = sbr.rel (0) target = $region9
  $region8: #{cnet25_forward.1} parent=0 // pred_region
    _
  $region9: #{cnet25_forward.1} parent=0 // pred_fallthru
    _
  // Predicated region
  $region10: #{cnet25_forward.1} parent=0 // pred_check
    _
  $region11: #{cnet25_forward.1} parent=0 // pred_check_branch
    %18 = sbr.rel (0) target = $region13
  $region12: #{cnet25_forward.1} parent=0 // pred_region
    _
  $region13: #{cnet25_forward.1} parent=0 // pred_fallthru
    _
  // Predicated region
  $region14: #{cnet25_forward.1} parent=0 // pred_check
    _
  $region15: #{cnet25_forward.1} parent=0 // pred_check_branch
    %20 = sbr.rel (0) target = $region17
  $region16: #{cnet25_forward.1} parent=0 // pred_region
    _
  $region17: #{cnet25_forward.1} parent=0 // pred_fallthru
    _
  // Predicated region
  $region18: #{cnet25_forward.1} parent=0 // pred_check
    _
  $region19: #{cnet25_forward.1} parent=0 // pred_check_branch
    %22 = sbr.rel (0) target = $region21
  $region20: #{cnet25_forward.1} parent=0 // pred_region
    _
  $region21: #{cnet25_forward.1} parent=0 // pred_fallthru
    _
  // Predicated region
  $region22: #{cnet25_forward.1} parent=0 // pred_check
    _
  $region23: #{cnet25_forward.1} parent=0 // pred_check_branch
    %24 = sbr.rel (0) target = $region25
  $region24: #{cnet25_forward.1} parent=0 // pred_region
    _
  $region25: #{cnet25_forward.1} parent=0 // pred_fallthru
    _
  // Predicated region
  $region26: #{cnet25_forward.1} parent=0 // pred_check
    _
  $region27: #{cnet25_forward.1} parent=0 // pred_check_branch
    %26 = sbr.rel (0) target = $region29
  $region28: #{cnet25_forward.1} parent=0 // pred_region
    _
  $region29: #{cnet25_forward.1} parent=0 // pred_fallthru
    _
  %v27 = vld [vmem:[%s0] sm:$0xff]
  %v28 = vld [vmem:[%s2] sm:$0xff]
  %v29 = vld [vmem:[%s2 + $0x8] sm:$0xff]
  %v30 = vld [vmem:[%s1] sm:$0xff]
  %v31 = vld [vmem:[%s3] sm:$0xf]
  %vm32 = vcmask 31744
  %v34 = vsel %vm32, %v30, 0
  %vm36 = vcmask 1043456
  %v38 = vsel %vm36, %v31, 0
  %40 = vmatprep.subr.mxu0 0.0
  %41 = vmatpush1.msra.mxu0 %v38
  %42 = vmatprep.subr.mxu0 0.0
  %43 = vmatpush1.msra.mxu0 0.0
  %44 = vmatprep.subr.mxu0 0.0
  %45 = vmatpush1.msra.mxu0 0.0
  %46 = vmatprep.subr.mxu0 0.0
  %47 = vmatpush1.msra.mxu0 0.0
  %48 = vmatprep.subr.mxu0 0.0
  %49 = vmatpush1.msra.mxu0 0.0
  %50 = vmatprep.subr.mxu0 0.0
  %51 = vmatpush1.msra.mxu0 0.0
  %52 = vmatprep.subr.mxu0 0.0
  %53 = vmatpush1.msra.mxu0 0.0
  %54 = vmatprep.subr.mxu0 0.0
  %55 = vmatpush1.msra.mxu0 0.0
  %56 = vmatprep.subr.mxu0 0.0
  %57 = vmatpush1.msra.mxu0 0.0
  %58 = vmatprep.subr.mxu0 0.0
  %59 = vmatpush1.msra.mxu0 0.0
  %60 = vmatprep.subr.mxu0 0.0
  %61 = vmatpush1.msra.mxu0 0.0
  %62 = vmatprep.subr.mxu0 0.0
  %63 = vmatpush1.msra.mxu0 0.0
  %64 = vmatprep.subr.mxu0 0.0
  %65 = vmatpush1.msra.mxu0 0.0
  %66 = vmatprep.subr.mxu0 0.0
  %67 = vmatpush1.msra.mxu0 0.0
  %68 = vmatprep.subr.mxu0 0.0
  %69 = vmatpush1.msra.mxu0 0.0
  %70 = vmatprep.subr.mxu0 0.0
  %71 = vmatpush1.msra.mxu0 0.0
  %72 = vmatprep.subr.mxu0 0.0
  %73 = vmatpush1.msra.mxu0 0.0
  %74 = vmatprep.subr.mxu0 0.0
  %75 = vmatpush1.msra.mxu0 0.0
  %76 = vmatprep.subr.mxu0 0.0
  %77 = vmatpush1.msra.mxu0 0.0
  %78 = vmatprep.subr.mxu0 0.0
  %79 = vmatpush1.msra.mxu0 0.0
  %80 = vmatprep.subr.mxu0 0.0
  %81 = vmatpush1.msra.mxu0 0.0
  %82 = vmatprep.subr.mxu0 0.0
  %83 = vmatpush1.msra.mxu0 0.0
  %84 = vmatprep.subr.mxu0 0.0
  %85 = vmatpush1.msra.mxu0 0.0
  %86 = vmatprep.subr.mxu0 0.0
  %87 = vmatpush1.msra.mxu0 0.0
  %88 = vmatprep.subr.mxu0 0.0
  %89 = vmatpush1.msra.mxu0 0.0
  %90 = vmatprep.subr.mxu0 0.0
  %91 = vmatpush1.msra.mxu0 0.0
  %92 = vmatprep.subr.mxu0 0.0
  %93 = vmatpush1.msra.mxu0 0.0
  %94 = vmatprep.subr.mxu0 0.0
  %95 = vmatpush1.msra.mxu0 0.0
  %96 = vmatprep.subr.mxu0 0.0
  %97 = vmatpush1.msra.mxu0 0.0
  %98 = vmatprep.subr.mxu0 0.0
  %99 = vmatpush1.msra.mxu0 0.0
  %100 = vmatprep.subr.mxu0 0.0
  %101 = vmatpush1.msra.mxu0 0.0
  %102 = vmatprep.subr.mxu0 0.0
  %103 = vmatpush1.msra.mxu0 0.0
  %104 = vmatprep.mubr.f32.mxu0 0.0
  %105 = vmatmul.mubr.f32.gmra.mrb[0].mxu0 %v34
  %v106 = vpop.f32.mrb[0].mxu0
  %v107 = vadd.f32 0.0, %v106
  %v108 = vpop.f32.mrb[0].mxu0
  %109 = vdwg.mxu0
  %vm110 = vcmask 130048
  %v112 = vsel %vm110, %v27, 0
  %114 = vmatprep.subr.mxu0 0.0
  %115 = vmatpush1.msra.mxu0 %v28
  %116 = vmatprep.subr.mxu0 0.0
  %117 = vmatpush1.msra.mxu0 %v29
  %118 = vmatprep.subr.mxu0 0.0
  %119 = vmatpush1.msra.mxu0 0.0
  %120 = vmatprep.subr.mxu0 0.0
  %121 = vmatpush1.msra.mxu0 0.0
  %122 = vmatprep.subr.mxu0 0.0
  %123 = vmatpush1.msra.mxu0 0.0
  %124 = vmatprep.subr.mxu0 0.0
  %125 = vmatpush1.msra.mxu0 0.0
  %126 = vmatprep.subr.mxu0 0.0
  %127 = vmatpush1.msra.mxu0 0.0
  %128 = vmatprep.subr.mxu0 0.0
  %129 = vmatpush1.msra.mxu0 0.0
  %130 = vmatprep.subr.mxu0 0.0
  %131 = vmatpush1.msra.mxu0 0.0
  %132 = vmatprep.subr.mxu0 0.0
  %133 = vmatpush1.msra.mxu0 0.0
  %134 = vmatprep.subr.mxu0 0.0
  %135 = vmatpush1.msra.mxu0 0.0
  %136 = vmatprep.subr.mxu0 0.0
  %137 = vmatpush1.msra.mxu0 0.0
  %138 = vmatprep.subr.mxu0 0.0
  %139 = vmatpush1.msra.mxu0 0.0
  %140 = vmatprep.subr.mxu0 0.0
  %141 = vmatpush1.msra.mxu0 0.0
  %142 = vmatprep.subr.mxu0 0.0
  %143 = vmatpush1.msra.mxu0 0.0
  %144 = vmatprep.subr.mxu0 0.0
  %145 = vmatpush1.msra.mxu0 0.0
  %146 = vmatprep.subr.mxu0 0.0
  %147 = vmatpush1.msra.mxu0 0.0
  %148 = vmatprep.subr.mxu0 0.0
  %149 = vmatpush1.msra.mxu0 0.0
  %150 = vmatprep.subr.mxu0 0.0
  %151 = vmatpush1.msra.mxu0 0.0
  %152 = vmatprep.subr.mxu0 0.0
  %153 = vmatpush1.msra.mxu0 0.0
  %154 = vmatprep.subr.mxu0 0.0
  %155 = vmatpush1.msra.mxu0 0.0
  %156 = vmatprep.subr.mxu0 0.0
  %157 = vmatpush1.msra.mxu0 0.0
  %158 = vmatprep.subr.mxu0 0.0
  %159 = vmatpush1.msra.mxu0 0.0
  %160 = vmatprep.subr.mxu0 0.0
  %161 = vmatpush1.msra.mxu0 0.0
  %162 = vmatprep.subr.mxu0 0.0
  %163 = vmatpush1.msra.mxu0 0.0
  %164 = vmatprep.subr.mxu0 0.0
  %165 = vmatpush1.msra.mxu0 0.0
  %166 = vmatprep.subr.mxu0 0.0
  %167 = vmatpush1.msra.mxu0 0.0
  %168 = vmatprep.subr.mxu0 0.0
  %169 = vmatpush1.msra.mxu0 0.0
  %170 = vmatprep.subr.mxu0 0.0
  %171 = vmatpush1.msra.mxu0 0.0
  %172 = vmatprep.subr.mxu0 0.0
  %173 = vmatpush1.msra.mxu0 0.0
  %174 = vmatprep.subr.mxu0 0.0
  %175 = vmatpush1.msra.mxu0 0.0
  %176 = vmatprep.subr.mxu0 0.0
  %177 = vmatpush1.msra.mxu0 0.0
  %178 = vmatprep.mubr.f32.mxu0 0.0
  %179 = vmatmul.mubr.f32.gmra.mrb[0].mxu0 %v112
  %v180 = vpop.f32.mrb[0].mxu0
  %v181 = vadd.f32 %v107, %v180
  %v182 = vpop.f32.mrb[0].mxu0
  %183 = vdwg.mxu0
  %v184 = vld [vmem:[%s4] sm:$0x1]
  %v186 = vlaneseq
  %v187 = vshrl.u32 %v186, 7
  %v188 = vsub.s32 0, %v187
  %v189 = vrot.slane %v184, %v188
  %v191 = vadd.f32 %v181, %v189
  %v192 = vmax.f32 %v191, 0.0
  %v193 = vld [vmem:[%s5] sm:$0xff]
  %v194 = vld [vmem:[%s5 + $0x8] sm:$0xff]
  %v195 = vld [vmem:[%s5 + $0x10] sm:$0xff]
  %v196 = vld [vmem:[%s5 + $0x18] sm:$0xff]
  %v197 = vld [vmem:[%s5 + $0x20] sm:$0xff]
  %v198 = vld [vmem:[%s5 + $0x28] sm:$0xff]
  %v199 = vld [vmem:[%s5 + $0x30] sm:$0xff]
  %v200 = vld [vmem:[%s5 + $0x38] sm:$0xff]
  %v201 = vld [vmem:[%s5 + $0x40] sm:$0xff]
  %v202 = vld [vmem:[%s5 + $0x48] sm:$0xff]
  %v203 = vld [vmem:[%s5 + $0x50] sm:$0xff]
  %v204 = vld [vmem:[%s5 + $0x58] sm:$0xff]
  %v205 = vld [vmem:[%s5 + $0x60] sm:$0xff]
  %v206 = vld [vmem:[%s5 + $0x68] sm:$0xff]
  %v207 = vld [vmem:[%s5 + $0x70] sm:$0xff]
  %v208 = vld [vmem:[%s5 + $0x78] sm:$0xff]
  %s209 = sld [smem:[#allocation2]]
  %v210 = vstv %s209
  %211 = vmatprep.subr.mxu0 0.0
  %212 = vmatpush1.msra.mxu0 %v193
  %213 = vmatprep.subr.mxu0 0.0
  %214 = vmatpush1.msra.mxu0 %v194
  %215 = vmatprep.subr.mxu0 0.0
  %216 = vmatpush1.msra.mxu0 %v195
  %217 = vmatprep.subr.mxu0 0.0
  %218 = vmatpush1.msra.mxu0 %v196
  %219 = vmatprep.subr.mxu0 0.0
  %220 = vmatpush1.msra.mxu0 %v197
  %221 = vmatprep.subr.mxu0 0.0
  %222 = vmatpush1.msra.mxu0 %v198
  %223 = vmatprep.subr.mxu0 0.0
  %224 = vmatpush1.msra.mxu0 %v199
  %225 = vmatprep.subr.mxu0 0.0
  %226 = vmatpush1.msra.mxu0 %v200
  %227 = vmatprep.subr.mxu0 0.0
  %228 = vmatpush1.msra.mxu0 %v201
  %229 = vmatprep.subr.mxu0 0.0
  %230 = vmatpush1.msra.mxu0 %v202
  %231 = vmatprep.subr.mxu0 0.0
  %232 = vmatpush1.msra.mxu0 %v203
  %233 = vmatprep.subr.mxu0 0.0
  %234 = vmatpush1.msra.mxu0 %v204
  %235 = vmatprep.subr.mxu0 0.0
  %236 = vmatpush1.msra.mxu0 %v205
  %237 = vmatprep.subr.mxu0 0.0
  %238 = vmatpush1.msra.mxu0 %v206
  %239 = vmatprep.subr.mxu0 0.0
  %240 = vmatpush1.msra.mxu0 %v207
  %241 = vmatprep.subr.mxu0 0.0
  %242 = vmatpush1.msra.mxu0 %v208
  %243 = vmatprep.subr.mxu0 0.0
  %244 = vmatpush1.msra.mxu0 0.0
  %245 = vmatprep.subr.mxu0 0.0
  %246 = vmatpush1.msra.mxu0 0.0
  %247 = vmatprep.subr.mxu0 0.0
  %248 = vmatpush1.msra.mxu0 0.0
  %249 = vmatprep.subr.mxu0 0.0
  %250 = vmatpush1.msra.mxu0 0.0
  %251 = vmatprep.subr.mxu0 0.0
  %252 = vmatpush1.msra.mxu0 0.0
  %253 = vmatprep.subr.mxu0 0.0
  %254 = vmatpush1.msra.mxu0 0.0
  %255 = vmatprep.subr.mxu0 0.0
  %256 = vmatpush1.msra.mxu0 0.0
  %257 = vmatprep.subr.mxu0 0.0
  %258 = vmatpush1.msra.mxu0 0.0
  %259 = vmatprep.subr.mxu0 0.0
  %260 = vmatpush1.msra.mxu0 0.0
  %261 = vmatprep.subr.mxu0 0.0
  %262 = vmatpush1.msra.mxu0 0.0
  %263 = vmatprep.subr.mxu0 0.0
  %264 = vmatpush1.msra.mxu0 0.0
  %265 = vmatprep.subr.mxu0 0.0
  %266 = vmatpush1.msra.mxu0 0.0
  %267 = vmatprep.subr.mxu0 0.0
  %268 = vmatpush1.msra.mxu0 0.0
  %269 = vmatprep.subr.mxu0 0.0
  %270 = vmatpush1.msra.mxu0 0.0
  %271 = vmatprep.subr.mxu0 0.0
  %272 = vmatpush1.msra.mxu0 0.0
  %273 = vmatprep.subr.mxu0 0.0
  %274 = vmatpush1.msra.mxu0 0.0
  %275 = vmatprep.mubr.f32.mxu0 0.0
  %276 = vmatmul.mubr.f32.gmra.mrb[0].mxu0 %v192
  %v277 = vpop.f32.mrb[0].mxu0
  %v278 = vadd.f32 %v210, %v277
  %v279 = vpop.f32.mrb[0].mxu0
  %280 = vdwg.mxu0
  %vm281 = vcmask 7168
  %282 = vst.msk [vmem:[%s7] sm:$0xff] %vm281, %v278
  // Predicated region
  $region30: #{cnet25_forward.1} parent=0 // pred_check
    _
  $region31: #{cnet25_forward.1} parent=0 // pred_check_branch
    %284 = sbr.rel (0) target = $region33
  $region32: #{cnet25_forward.1} parent=0 // pred_region
    _
  $region33: #{cnet25_forward.1} parent=0 // pred_fallthru
    _
  // Predicated region
  $region34: #{cnet25_forward.1} parent=0 // pred_check
    _
  $region35: #{cnet25_forward.1} parent=0 // pred_check_branch
    %286 = sbr.rel (0) target = $region37
  $region36: #{cnet25_forward.1} parent=0 // pred_region
    _
  $region37: #{cnet25_forward.1} parent=0 // pred_fallthru
    _

</llo_original>
